<compile_context>
chip_gen: v5e
topology: v5e:2x2
jax: 0.10.0
libtpu: 0.0.40
codegen_flags: <defaults>
</compile_context>

<pallas_src>
import jax
import jax.numpy as jnp
from jax.experimental import pallas as pl
from jax.experimental.pallas import tpu as pltpu


def _fusion_kernel(xc_ref, xp_ref, wc_ref, wp_ref, b_ref, o_ref):
    # xc_ref, xp_ref: (C, tile_L)   wc_ref, wp_ref: (C_out, C)
    # b_ref: (C_out, 1)             o_ref: (C_out, tile_L)
    acc = jnp.dot(wc_ref[...], xc_ref[...], preferred_element_type=jnp.float32)
    acc = acc + jnp.dot(wp_ref[...], xp_ref[...],
                        preferred_element_type=jnp.float32)
    o_ref[...] = (acc + b_ref[...]).astype(o_ref.dtype)


def _choose_tile_l(l, cap):
    """Pick the largest legal lane tile <= cap.

    Preference order: full L (always a legal block), then the largest
    128-multiple divisor of L (no ragged tail), then a plain 128-multiple
    (Pallas masks the ragged last block's out-of-bounds writes; columns are
    independent, so garbage padding columns never reach the real output).
    """
    if l <= cap:
        return l
    cap128 = max(128, cap - cap % 128)
    t = cap128
    while t >= 128:
        if l % t == 0:
            return t
        t -= 128
    return cap128


def fusion_conv1x1(in_cls, in_prg, weight, bias, *,
                   tile_cap=None, force_pallas=False,
                   vmem_budget_bytes=10 * 1024 * 1024):
    """Pallas equivalent of ProbabilityProgressFusionModel.forward.

    in_cls, in_prg: (N, C, L)           f32 or bf16
    weight:         (C, 2C) or (C, 2C, 1)  Conv1d weight
    bias:           (C,)
    returns:        (N, C, L) in the activation dtype
    """
    n, c, l = in_cls.shape
    if weight.ndim == 3:          # native Conv1d weight (C, 2C, 1)
        weight = weight[..., 0]
    c_out, c_in = weight.shape
    assert c_in == 2 * c, "weight must be (C_out, 2*C_in_per_branch)"
    assert in_prg.shape == (n, c, l)

    # Small-problem fast path: kernel-launch + grid machinery beats fused XLA
    # only once there is real HBM traffic to hide it behind.
    if not force_pallas and n * l * max(c, c_out) < (1 << 14):
        x_cat = jnp.concatenate([in_cls, in_prg], axis=1)
        return (jnp.einsum("oc,ncl->nol", weight, x_cat)
                + bias[None, :, None]).astype(in_cls.dtype)

    dtype_bytes = jnp.dtype(in_cls.dtype).itemsize
    if tile_cap is None:
        # Double-buffered per-lane footprint: two input slabs + one output slab.
        per_lane = 2 * (2 * c + c_out) * dtype_bytes
        tile_cap = max(128, (vmem_budget_bytes // per_lane) // 128 * 128)

    tile_l = _choose_tile_l(l, tile_cap)
    grid_l = pl.cdiv(l, tile_l)

    # Split the weight so the kernel never needs the channel concat.
    w_cls = weight[:, :c]
    w_prg = weight[:, c:]
    b2d = bias.reshape(c_out, 1)

    cost = pl.CostEstimate(
        flops=2 * n * l * c_out * (2 * c),
        transcendentals=0,
        bytes_accessed=dtype_bytes * (2 * c * n * l + c_out * n * l)
        + 4 * (c_out * 2 * c + c_out),
    )

    return pl.pallas_call(
        _fusion_kernel,
        out_shape=jax.ShapeDtypeStruct((n, c_out, l), in_cls.dtype),
        grid_spec=pltpu.PrefetchScalarGridSpec(
            num_scalar_prefetch=0,
            grid=(n, grid_l),
            in_specs=[
                pl.BlockSpec((pl.Squeezed(), c, tile_l),
                             lambda b, i: (b, 0, i)),          # cls slab
                pl.BlockSpec((pl.Squeezed(), c, tile_l),
                             lambda b, i: (b, 0, i)),          # prg slab
                pl.BlockSpec((c_out, c), lambda b, i: (0, 0)),  # W_cls (resident)
                pl.BlockSpec((c_out, c), lambda b, i: (0, 0)),  # W_prg (resident)
                pl.BlockSpec((c_out, 1), lambda b, i: (0, 0)),  # bias (resident)
            ],
            out_specs=pl.BlockSpec((pl.Squeezed(), c_out, tile_l),
                                   lambda b, i: (b, 0, i)),
        ),
        compiler_params=pltpu.CompilerParams(
            dimension_semantics=("parallel", "parallel")),
        cost_estimate=cost,
    )(in_cls, in_prg, w_cls, w_prg, b2d)


if __name__ == "__main__":
    num_classes = 8
    batch = 2

    key = jax.random.PRNGKey(0)
    k1, k2, k3, k4, k5, k6 = jax.random.split(key, 6)

    fan_in = num_classes * 2
    bound = float(fan_in) ** -0.5
    weight = jax.random.uniform(
        k3, (num_classes, num_classes * 2), jnp.float32, -bound, bound)
    bias = jax.random.uniform(
        k4, (num_classes,), jnp.float32, -bound, bound)

    def ref_fn(a, b):
        x_cat = jnp.concatenate([a, b], axis=1)
        return jnp.einsum("oc,ncl->nol", weight, x_cat) + bias[None, :, None]

    # Test 1: tiny module-sized shapes (batch=2, C=8, L=16); force the Pallas
    # path so the kernel itself is exercised (full-L block, grid=(2, 1)).
    length = 16
    in_cls = jax.random.normal(k1, (batch, num_classes, length), jnp.float32)
    in_prg = jax.random.normal(k2, (batch, num_classes, length), jnp.float32)
    out = jax.block_until_ready(
        fusion_conv1x1(in_cls, in_prg, weight, bias, force_pallas=True))
    assert out.shape == (batch, num_classes, length)
    assert jnp.allclose(out, ref_fn(in_cls, in_prg), atol=1e-5, rtol=1e-5)

    # Test 2: multi-tile lane grid (tile_cap=128 -> grid=(2, 3), 128-aligned
    # unmasked stores) to exercise the tiled path.
    length2 = 384
    in_cls2 = jax.random.normal(k5, (batch, num_classes, length2), jnp.float32)
    in_prg2 = jax.random.normal(k6, (batch, num_classes, length2), jnp.float32)
    out2 = jax.block_until_ready(
        fusion_conv1x1(in_cls2, in_prg2, weight, bias,
                       tile_cap=128, force_pallas=True))
    assert out2.shape == (batch, num_classes, length2)
    assert jnp.allclose(out2, ref_fn(in_cls2, in_prg2), atol=1e-5, rtol=1e-5)

    print("KERNEL_OK")
</pallas_src>

<mosaic_0001>
module attributes {stable_mosaic.version = 11 : i64} {
  func.func @_fusion_kernel(%arg0: i32, %arg1: i32, %arg2: memref<1x8x16xf32, #tpu.memory_space<vmem>>, %arg3: memref<1x8x16xf32, #tpu.memory_space<vmem>>, %arg4: memref<8x8xf32, #tpu.memory_space<vmem>>, %arg5: memref<8x8xf32, #tpu.memory_space<vmem>>, %arg6: memref<8x1xf32, #tpu.memory_space<vmem>>, %arg7: memref<1x8x16xf32, #tpu.memory_space<vmem>>) attributes {dimension_semantics = [#tpu.dimension_semantics<parallel>, #tpu.dimension_semantics<parallel>], iteration_bounds = array<i64: 2, 1>, scalar_prefetch = 0 : i64, scratch_operands = 0 : i64, tpu.core_type = #tpu.core_type<tc>, window_params = [{transform_indices = @transform_0, window_bounds = array<i64: 1, 8, 16>}, {transform_indices = @transform_1, window_bounds = array<i64: 1, 8, 16>}, {pipeline_mode = #tpu.pipeline_mode<synchronous>, transform_indices = @transform_2, window_bounds = array<i64: 8, 8>}, {pipeline_mode = #tpu.pipeline_mode<synchronous>, transform_indices = @transform_3, window_bounds = array<i64: 8, 8>}, {pipeline_mode = #tpu.pipeline_mode<synchronous>, transform_indices = @transform_4, window_bounds = array<i64: 8, 1>}, {transform_indices = @transform_5, window_bounds = array<i64: 1, 8, 16>}]} {
    %c0 = arith.constant 0 : index
    %c0_0 = arith.constant 0 : index
    %0 = vector.load %arg4[%c0, %c0_0] : memref<8x8xf32, #tpu.memory_space<vmem>>, vector<8x8xf32>
    %c0_1 = arith.constant 0 : index
    %c0_2 = arith.constant 0 : index
    %c0_3 = arith.constant 0 : index
    %1 = vector.load %arg2[%c0_1, %c0_2, %c0_3] : memref<1x8x16xf32, #tpu.memory_space<vmem>>, vector<1x8x16xf32>
    %2 = vector.shape_cast %1 : vector<1x8x16xf32> to vector<8x16xf32>
    %cst = arith.constant dense<0.000000e+00> : vector<8x16xf32>
    %3 = tpu.matmul %0, %2, %cst {dimension_numbers = #tpu.dot_dimension_numbers<[1], [0], [0], [1], [0, 0, 1, 1], [], []>} : vector<8x8xf32>, vector<8x16xf32>, vector<8x16xf32> -> vector<8x16xf32>
    %c0_4 = arith.constant 0 : index
    %c0_5 = arith.constant 0 : index
    %4 = vector.load %arg5[%c0_4, %c0_5] : memref<8x8xf32, #tpu.memory_space<vmem>>, vector<8x8xf32>
    %c0_6 = arith.constant 0 : index
    %c0_7 = arith.constant 0 : index
    %c0_8 = arith.constant 0 : index
    %5 = vector.load %arg3[%c0_6, %c0_7, %c0_8] : memref<1x8x16xf32, #tpu.memory_space<vmem>>, vector<1x8x16xf32>
    %6 = vector.shape_cast %5 : vector<1x8x16xf32> to vector<8x16xf32>
    %cst_9 = arith.constant dense<0.000000e+00> : vector<8x16xf32>
    %7 = tpu.matmul %4, %6, %cst_9 {dimension_numbers = #tpu.dot_dimension_numbers<[1], [0], [0], [1], [0, 0, 1, 1], [], []>} : vector<8x8xf32>, vector<8x16xf32>, vector<8x16xf32> -> vector<8x16xf32>
    %8 = arith.addf %3, %7 : vector<8x16xf32>
    %c0_10 = arith.constant 0 : index
    %c0_11 = arith.constant 0 : index
    %9 = vector.load %arg6[%c0_10, %c0_11] : memref<8x1xf32, #tpu.memory_space<vmem>>, vector<8x1xf32>
    %10 = vector.broadcast %9 : vector<8x1xf32> to vector<8x16xf32>
    %11 = arith.addf %8, %10 : vector<8x16xf32>
    %c0_12 = arith.constant 0 : index
    %c0_13 = arith.constant 0 : index
    %c0_14 = arith.constant 0 : index
    %12 = vector.load %arg7[%c0_12, %c0_13, %c0_14] : memref<1x8x16xf32, #tpu.memory_space<vmem>>, vector<1x8x16xf32>
    %13 = vector.shape_cast %12 : vector<1x8x16xf32> to vector<8x16xf32>
    %14 = vector.shape_cast %11 : vector<8x16xf32> to vector<1x8x16xf32>
    tpu.vector_store %arg7[%c0_12, %c0_13, %c0_14], %14 {strides = array<i32>} : memref<1x8x16xf32, #tpu.memory_space<vmem>>, vector<1x8x16xf32>,
    return
  }
  func.func @transform_0(%arg0: i32, %arg1: i32) -> (i32, i32, i32) {
    %c0_i32 = arith.constant 0 : i32
    %c0_i32_0 = arith.constant 0 : i32
    return %arg0, %c0_i32, %arg1 : i32, i32, i32
  }
  func.func @transform_1(%arg0: i32, %arg1: i32) -> (i32, i32, i32) {
    %c0_i32 = arith.constant 0 : i32
    %c0_i32_0 = arith.constant 0 : i32
    return %arg0, %c0_i32, %arg1 : i32, i32, i32
  }
  func.func @transform_2(%arg0: i32, %arg1: i32) -> (i32, i32) {
    %c0_i32 = arith.constant 0 : i32
    %c0_i32_0 = arith.constant 0 : i32
    %c0_i32_1 = arith.constant 0 : i32
    return %c0_i32, %c0_i32_0 : i32, i32
  }
  func.func @transform_3(%arg0: i32, %arg1: i32) -> (i32, i32) {
    %c0_i32 = arith.constant 0 : i32
    %c0_i32_0 = arith.constant 0 : i32
    %c0_i32_1 = arith.constant 0 : i32
    return %c0_i32, %c0_i32_0 : i32, i32
  }
  func.func @transform_4(%arg0: i32, %arg1: i32) -> (i32, i32) {
    %c0_i32 = arith.constant 0 : i32
    %c0_i32_0 = arith.constant 0 : i32
    %c0_i32_1 = arith.constant 0 : i32
    return %c0_i32, %c0_i32_0 : i32, i32
  }
  func.func @transform_5(%arg0: i32, %arg1: i32) -> (i32, i32, i32) {
    %c0_i32 = arith.constant 0 : i32
    %c0_i32_0 = arith.constant 0 : i32
    return %arg0, %c0_i32, %arg1 : i32, i32, i32
  }
}

</mosaic_0001>

<llo_original>
// kernel: tpu_custom_call.1
$region0: #{tpu_custom_call.1}
  #allocation0 [shape = 'u32[]', space=smem, size = 0x4, offset = 0x4, fixed_abs, tag = 'smem constant byte address 0x4 - core index']
  #allocation1 [shape = 'u32[72,128]{1,0:T(1,128)}', space=vmem, size = 0x9000, scoped, tag = 'internal scratch']
  %s0 = inlined_call_operand.hbm [shape: f32[2,8,16], index: 0, kind: input, shape index: {}]
  %s1 = inlined_call_operand.hbm [shape: f32[2,8,16], index: 1, kind: input, shape index: {}]
  %s2 = inlined_call_operand.vmem [shape: f32[8,8], index: 2, kind: input, shape index: {}]
  %s3 = inlined_call_operand.hbm [shape: f32[8,8], index: 3, kind: input, shape index: {}]
  %s4 = inlined_call_operand.vmem [shape: f32[8,1], index: 4, kind: input, shape index: {}]
  %s5 = inlined_call_operand.hbm [shape: f32[2,8,16], index: 5, kind: output, shape index: {}]
  %s6 = sld [smem:[#allocation0]]
  $region65: #{tpu_custom_call.1} parent=0
    _
  %s8 = ssub.s32 1, %s6
  %s9 = scalar_select 0, %s8, %s6
  $region1: #{tpu_custom_call.1} parent=0
    #allocation2 [shape = 'u8[8192]{0}', space=vmem, size = 0x2000, scoped, tag = 'input window, operand 0']
    #allocation3 [shape = 's32[2]{0}', space=sflag, size = 0x8, scoped, tag = 'scoped memory for tpu_custom_call.1']
    #allocation4 [shape = 's32[2]{0}', space=sflag, size = 0x8, scoped, tag = 'scoped memory for tpu_custom_call.1']
    #allocation5 [shape = 'u8[8192]{0}', space=vmem, size = 0x2000, scoped, tag = 'input window, operand 1']
    #allocation6 [shape = 's32[2]{0}', space=sflag, size = 0x8, scoped, tag = 'scoped memory for tpu_custom_call.1']
    #allocation7 [shape = 'u8[4096]{0}', space=vmem, size = 0x1000, scoped, tag = 'input window, operand 3, single buffered']
    #allocation8 [shape = 'u8[8192]{0}', space=vmem, size = 0x2000, scoped, tag = 'output window, operand 0']
    %10 = vsyncpa [#allocation3], 0
    %s11 = scalar_lea.sflag [#allocation3], 1
    %12 = vsyncpa %s11, 0
    %13 = vsyncpa [#allocation6], 0
    %s14 = scalar_lea.sflag [#allocation6], 1
    %15 = vsyncpa %s14, 0
    %16 = vsyncpa [#allocation4], 0
    %s17 = scalar_lea.sflag [#allocation4], 1
    %18 = vsyncpa %s17, 0
    loop: start=0, step=1, limit=4
    $region2: #{tpu_custom_call.1} parent=1 // loop_pre_header
      _
    $region3: #{tpu_custom_call.1} parent=1 // loop_header
      %s20 = sphi 0, %s24
      %p21 = scmp.ge.s32.totalorder %s20, 4
      %s27 = sphi 0, %s39
      %s28 = sphi 0, %s35
      %s29 = sphi 0, %s27
      %s30 = sphi 0, %s28
      %s31 = sphi 0, %s29
      %s32 = sphi 0, %s30
      %s44 = sphi 0, %s46
      %s47 = sphi 0, %s44
      %s48 = sphi 0, %s47
      %s64 = sphi 0, %s48
      %s72 = sphi 0, %s74
      %s75 = sphi 0, %s72
      %s76 = sphi 0, %s75
      %s92 = sphi 0, %s76
      %s96 = sphi 0, %s96
      %s98 = sphi 0, %s96
      %s99 = sphi 0, %s98
      %s113 = sphi 0, %s99
      %s117 = sphi 0, %s117
      %s119 = sphi 0, %s117
      %s120 = sphi 0, %s119
      %s134 = sphi 0, %s120
      %s138 = sphi 0, %s138
      %s140 = sphi 0, %s138
      %s141 = sphi 0, %s140
      %s155 = sphi 0, %s141
      %s163 = sphi 0, %s165
      %s166 = sphi 0, %s163
      %s167 = sphi 0, %s166
      %s183 = sphi 0, %s167
    $region4: #{tpu_custom_call.1} parent=1 // loop_header_branch
      %23 = sbr.rel (%p21) target = $region8
    $region5: #{tpu_custom_call.1} parent=1 // loop_body
      %s25 = ssub.s32 %s20, 1
      %s26 = ssub.s32 %s20, 2
      %s33 = sadd.s32 1, %s28
      %p34 = scmp.ge.s32.totalorder %s33, 1
      %s35 = scalar_select %p34, 0, %s33
      %s36 = sadd.s32 1, %s27
      %s37 = scalar_select %p34, %s36, %s27
      %p38 = scmp.ge.s32.totalorder %s37, 2
      %s39 = scalar_select %p38, 0, %s37
      %s40 = ssub.s32 %s27, %s39
      %s41 = ssub.s32 %s28, %s35
      %s42 = sor.u32 %s40, %s41
      %p43 = scmp.eq.s32.totalorder %s42, 0
      %s45 = sadd.s32 %s44, 1
      %s46 = scalar_select %p43, %s44, %s45
      %p49 = pneg %p43
      %p50 = scmp.eq.s32.totalorder %s20, 1
      %p51 = por %p49, %p50
      %p52 = scmp.ne.s32.totalorder %s44, %s47
      %p53 = scmp.eq.s32.totalorder %s20, 0
      %p54 = por %p52, %p53
      %p55 = scmp.ne.s32.totalorder %s44, %s47
      %p56 = scmp.eq.s32.totalorder %s25, 1
      %p57 = por %p55, %p56
      %p58 = scmp.ne.s32.totalorder %s47, %s48
      %p59 = scmp.eq.s32.totalorder %s25, 0
      %p60 = por %p58, %p59
      %p61 = scmp.ne.s32.totalorder %s47, %s48
      %p62 = scmp.eq.s32.totalorder %s26, 1
      %p63 = por %p61, %p62
      %p65 = scmp.ne.s32.totalorder %s48, %s64
      %p66 = scmp.eq.s32.totalorder %s26, 0
      %p67 = por %p65, %p66
      %s68 = ssub.s32 %s27, %s39
      %s69 = ssub.s32 %s28, %s35
      %s70 = sor.u32 %s68, %s69
      %p71 = scmp.eq.s32.totalorder %s70, 0
      %s73 = sadd.s32 %s72, 1
      %s74 = scalar_select %p71, %s72, %s73
      %p77 = pneg %p71
      %p78 = scmp.eq.s32.totalorder %s20, 1
      %p79 = por %p77, %p78
      %p80 = scmp.ne.s32.totalorder %s72, %s75
      %p81 = scmp.eq.s32.totalorder %s20, 0
      %p82 = por %p80, %p81
      %p83 = scmp.ne.s32.totalorder %s72, %s75
      %p84 = scmp.eq.s32.totalorder %s25, 1
      %p85 = por %p83, %p84
      %p86 = scmp.ne.s32.totalorder %s75, %s76
      %p87 = scmp.eq.s32.totalorder %s25, 0
      %p88 = por %p86, %p87
      %p89 = scmp.ne.s32.totalorder %s75, %s76
      %p90 = scmp.eq.s32.totalorder %s26, 1
      %p91 = por %p89, %p90
      %p93 = scmp.ne.s32.totalorder %s76, %s92
      %p94 = scmp.eq.s32.totalorder %s26, 0
      %p95 = por %p93, %p94
      %s97 = sadd.s32 %s96, 1
      %p100 = scmp.eq.s32.totalorder %s20, 1
      %p101 = scmp.ne.s32.totalorder %s96, %s98
      %p102 = scmp.eq.s32.totalorder %s20, 0
      %p103 = por %p101, %p102
      %p104 = scmp.ne.s32.totalorder %s96, %s98
      %p105 = scmp.eq.s32.totalorder %s25, 1
      %p106 = por %p104, %p105
      %p107 = scmp.ne.s32.totalorder %s98, %s99
      %p108 = scmp.eq.s32.totalorder %s25, 0
      %p109 = por %p107, %p108
      %p110 = scmp.ne.s32.totalorder %s98, %s99
      %p111 = scmp.eq.s32.totalorder %s26, 1
      %p112 = por %p110, %p111
      %p114 = scmp.ne.s32.totalorder %s99, %s113
      %p115 = scmp.eq.s32.totalorder %s26, 0
      %p116 = por %p114, %p115
      %s118 = sadd.s32 %s117, 1
      %p121 = scmp.eq.s32.totalorder %s20, 1
      %p122 = scmp.ne.s32.totalorder %s117, %s119
      %p123 = scmp.eq.s32.totalorder %s20, 0
      %p124 = por %p122, %p123
      %p125 = scmp.ne.s32.totalorder %s117, %s119
      %p126 = scmp.eq.s32.totalorder %s25, 1
      %p127 = por %p125, %p126
      %p128 = scmp.ne.s32.totalorder %s119, %s120
      %p129 = scmp.eq.s32.totalorder %s25, 0
      %p130 = por %p128, %p129
      %p131 = scmp.ne.s32.totalorder %s119, %s120
      %p132 = scmp.eq.s32.totalorder %s26, 1
      %p133 = por %p131, %p132
      %p135 = scmp.ne.s32.totalorder %s120, %s134
      %p136 = scmp.eq.s32.totalorder %s26, 0
      %p137 = por %p135, %p136
      %s139 = sadd.s32 %s138, 1
      %p142 = scmp.eq.s32.totalorder %s20, 1
      %p143 = scmp.ne.s32.totalorder %s138, %s140
      %p144 = scmp.eq.s32.totalorder %s20, 0
      %p145 = por %p143, %p144
      %p146 = scmp.ne.s32.totalorder %s138, %s140
      %p147 = scmp.eq.s32.totalorder %s25, 1
      %p148 = por %p146, %p147
      %p149 = scmp.ne.s32.totalorder %s140, %s141
      %p150 = scmp.eq.s32.totalorder %s25, 0
      %p151 = por %p149, %p150
      %p152 = scmp.ne.s32.totalorder %s140, %s141
      %p153 = scmp.eq.s32.totalorder %s26, 1
      %p154 = por %p152, %p153
      %p156 = scmp.ne.s32.totalorder %s141, %s155
      %p157 = scmp.eq.s32.totalorder %s26, 0
      %p158 = por %p156, %p157
      %s159 = ssub.s32 %s27, %s39
      %s160 = ssub.s32 %s28, %s35
      %s161 = sor.u32 %s159, %s160
      %p162 = scmp.eq.s32.totalorder %s161, 0
      %s164 = sadd.s32 %s163, 1
      %s165 = scalar_select %p162, %s163, %s164
      %p168 = pneg %p162
      %p169 = scmp.eq.s32.totalorder %s20, 1
      %p170 = por %p168, %p169
      %p171 = scmp.ne.s32.totalorder %s163, %s166
      %p172 = scmp.eq.s32.totalorder %s20, 0
      %p173 = por %p171, %p172
      %p174 = scmp.ne.s32.totalorder %s163, %s166
      %p175 = scmp.eq.s32.totalorder %s25, 1
      %p176 = por %p174, %p175
      %p177 = scmp.ne.s32.totalorder %s166, %s167
      %p178 = scmp.eq.s32.totalorder %s25, 0
      %p179 = por %p177, %p178
      %p180 = scmp.ne.s32.totalorder %s166, %s167
      %p181 = scmp.eq.s32.totalorder %s26, 1
      %p182 = por %p180, %p181
      %p184 = scmp.ne.s32.totalorder %s167, %s183
      %p185 = scmp.eq.s32.totalorder %s26, 0
      %p186 = por %p184, %p185
      %p187 = scmp.le.s32.totalorder 1, %s20
      %p188 = scmp.lt.s32.totalorder %s20, 3
      %p189 = pnand %p187, %p188
      %p190 = pneg %p189
      // Predicated region
      $region9: #{tpu_custom_call.1} parent=5 // pred_check
        _
      $region10: #{tpu_custom_call.1} parent=5 // pred_check_branch
        %192 = sbr.rel (%p189) target = $region12
      $region11: #{tpu_custom_call.1} parent=5 // pred_region
        %s193 = ssub.s32 %s20, 1
        // Predicated region
        $region13: #{tpu_custom_call.1} parent=11 // pred_check
          %p194 = pneg %p109
        $region14: #{tpu_custom_call.1} parent=11 // pred_check_branch
          %196 = sbr.rel (%p194) target = $region16
        $region15: #{tpu_custom_call.1} parent=11 // pred_region
          _
        $region16: #{tpu_custom_call.1} parent=11 // pred_fallthru
          _
        // Predicated region
        $region17: #{tpu_custom_call.1} parent=11 // pred_check
          %p197 = pneg %p130
        $region18: #{tpu_custom_call.1} parent=11 // pred_check_branch
          %199 = sbr.rel (%p197) target = $region20
        $region19: #{tpu_custom_call.1} parent=11 // pred_region
          %201 = vsyncadd [#allocation6], 0
          %s203 = sshll.u32 %s3, 4
          %s204 = int_to_ptr.hbm [resolvable:$true] %s203
          %s205 = sshll.u32 [#allocation7], 4
          %s206 = int_to_ptr.vmem [resolvable:$true] %s205
          %208 = dma.hbm_to_vmem [thread:$0]  %s204, 128, %s206, [#allocation6]
        $region20: #{tpu_custom_call.1} parent=11 // pred_fallthru
          _
        // Predicated region
        $region21: #{tpu_custom_call.1} parent=11 // pred_check
          %p209 = pneg %p151
        $region22: #{tpu_custom_call.1} parent=11 // pred_check_branch
          %211 = sbr.rel (%p209) target = $region24
        $region23: #{tpu_custom_call.1} parent=11 // pred_region
          _
        $region24: #{tpu_custom_call.1} parent=11 // pred_fallthru
          _
      $region12: #{tpu_custom_call.1} parent=5 // pred_fallthru
        _
      %p212 = scmp.lt.s32.totalorder %s20, 2
      // Predicated region
      $region25: #{tpu_custom_call.1} parent=5 // pred_check
        %p213 = pneg %p212
      $region26: #{tpu_custom_call.1} parent=5 // pred_check_branch
        %215 = sbr.rel (%p213) target = $region28
      $region27: #{tpu_custom_call.1} parent=5 // pred_region
        // Predicated region
        $region29: #{tpu_custom_call.1} parent=27 // pred_check
          %p216 = pneg %p54
        $region30: #{tpu_custom_call.1} parent=27 // pred_check_branch
          %218 = sbr.rel (%p216) target = $region32
        $region31: #{tpu_custom_call.1} parent=27 // pred_region
          %s219 = sand.u32 %s44, 1
          %s220 = scalar_lea.sflag [#allocation3], %s219
          %s221 = sand.u32 %s44, 1
          %s222 = smul.addr %s221, 8
          %s223 = scalar_lea.vmem [#allocation2], %s222
          %225 = vsyncadd %s220, 0
          %s226 = sadd.s32 %s28, %s27
          %s227 = smul.addr %s226, 8
          %s228 = scalar_lea.hbm %s0, %s227
          %s230 = sshll.u32 %s228, 4
          %s231 = int_to_ptr.hbm [resolvable:$true] %s230
          %s232 = sshll.u32 %s223, 4
          %s233 = int_to_ptr.vmem [resolvable:$true] %s232
          %235 = dma.hbm_to_vmem [thread:$0]  %s231, 128, %s233, %s220
        $region32: #{tpu_custom_call.1} parent=27 // pred_fallthru
          _
        // Predicated region
        $region33: #{tpu_custom_call.1} parent=27 // pred_check
          %p236 = pneg %p82
        $region34: #{tpu_custom_call.1} parent=27 // pred_check_branch
          %238 = sbr.rel (%p236) target = $region36
        $region35: #{tpu_custom_call.1} parent=27 // pred_region
          %s239 = sand.u32 %s20, 1
          %s240 = scalar_lea.sflag [#allocation6], %s239
          %s241 = sand.u32 %s72, 1
          %s242 = smul.addr %s241, 8
          %s243 = scalar_lea.vmem [#allocation5], %s242
          %245 = vsyncadd %s240, 0
          %s246 = sadd.s32 %s28, %s27
          %s247 = smul.addr %s246, 8
          %s248 = scalar_lea.hbm %s1, %s247
          %s250 = sshll.u32 %s248, 4
          %s251 = int_to_ptr.hbm [resolvable:$true] %s250
          %s252 = sshll.u32 %s243, 4
          %s253 = int_to_ptr.vmem [resolvable:$true] %s252
          %255 = dma.hbm_to_vmem [thread:$0]  %s251, 128, %s253, %s240
        $region36: #{tpu_custom_call.1} parent=27 // pred_fallthru
          _
      $region28: #{tpu_custom_call.1} parent=5 // pred_fallthru
        _
      %p256 = scmp.le.s32.totalorder 1, %s20
      %p257 = scmp.lt.s32.totalorder %s20, 3
      %p258 = pnand %p256, %p257
      %p259 = pneg %p258
      // Predicated region
      $region37: #{tpu_custom_call.1} parent=5 // pred_check
        _
      $region38: #{tpu_custom_call.1} parent=5 // pred_check_branch
        %261 = sbr.rel (%p258) target = $region40
      $region39: #{tpu_custom_call.1} parent=5 // pred_region
        %s262 = ssub.s32 %s20, 1
        %s263 = sand.u32 %s47, 1
        %s264 = scalar_lea.sflag [#allocation3], %s263
        %s265 = sand.u32 %s47, 1
        %s266 = smul.addr %s265, 8
        %s267 = scalar_lea.vmem [#allocation2], %s266
        // Predicated region
        $region41: #{tpu_custom_call.1} parent=39 // pred_check
          %p268 = pneg %p60
        $region42: #{tpu_custom_call.1} parent=39 // pred_check_branch
          %270 = sbr.rel (%p268) target = $region44
        $region43: #{tpu_custom_call.1} parent=39 // pred_region
          %272 = dma.done %s264, 128
        $region44: #{tpu_custom_call.1} parent=39 // pred_fallthru
          _
        %s273 = sand.u32 %s25, 1
        %s274 = scalar_lea.sflag [#allocation6], %s273
        %s275 = sand.u32 %s75, 1
        %s276 = smul.addr %s275, 8
        %s277 = scalar_lea.vmem [#allocation5], %s276
        // Predicated region
        $region45: #{tpu_custom_call.1} parent=39 // pred_check
          %p278 = pneg %p88
        $region46: #{tpu_custom_call.1} parent=39 // pred_check_branch
          %280 = sbr.rel (%p278) target = $region48
        $region47: #{tpu_custom_call.1} parent=39 // pred_region
          %282 = dma.done %s274, 128
        $region48: #{tpu_custom_call.1} parent=39 // pred_fallthru
          _
        // Predicated region
        $region49: #{tpu_custom_call.1} parent=39 // pred_check
          %p283 = pneg %p130
        $region50: #{tpu_custom_call.1} parent=39 // pred_check_branch
          %285 = sbr.rel (%p283) target = $region52
        $region51: #{tpu_custom_call.1} parent=39 // pred_region
          %287 = dma.done [#allocation6], 128
        $region52: #{tpu_custom_call.1} parent=39 // pred_fallthru
          _
        %s288 = sand.u32 %s47, 1
        %s289 = scalar_lea.sflag [#allocation3], %s288
        %s290 = sand.u32 %s47, 1
        %s291 = smul.addr %s290, 8
        %s292 = scalar_lea.vmem [#allocation2], %s291
        %p293 = pneg %p60
        %p294 = pneg %p57
        %s295 = sand.u32 %s25, 1
        %s296 = scalar_lea.sflag [#allocation6], %s295
        %s297 = sand.u32 %s75, 1
        %s298 = smul.addr %s297, 8
        %s299 = scalar_lea.vmem [#allocation5], %s298
        %p300 = pneg %p88
        %p301 = pneg %p85
        %p302 = pneg %p109
        %p303 = pneg %p106
        %p304 = pneg %p130
        %p305 = pneg %p127
        %p306 = pneg %p151
        %p307 = pneg %p148
        %p308 = pneg %p179
        %p309 = pneg %p176
        %s310 = sand.u32 %s166, 1
        %s311 = scalar_lea.sflag [#allocation4], %s310
        %s312 = sand.u32 %s166, 1
        %s313 = smul.addr %s312, 8
        %s314 = scalar_lea.vmem [#allocation8], %s313
        %v315 = vld [vmem:[%s2] sm:$0xff]
        %v316 = vld [vmem:[%s267] sm:$0xff]
        %v317 = vld [vmem:[#allocation7] sm:$0xff]
        %v318 = vld [vmem:[%s277] sm:$0xff]
        %vm319 = vcmask 64512
        %v321 = vsel %vm319, %v317, 0
        %323 = vmatpush.msra.mxu0 0.0
        %324 = vmatpush.msra.mxu0 0.0
        %325 = vmatpush.msra.mxu0 0.0
        %326 = vmatpush.msra.mxu0 0.0
        %327 = vmatpush.msra.mxu0 0.0
        %328 = vmatpush.msra.mxu0 0.0
        %329 = vmatpush.msra.mxu0 0.0
        %330 = vmatpush.msra.mxu0 0.0
        %331 = vmatpush.msra.mxu0 0.0
        %332 = vmatpush.msra.mxu0 0.0
        %333 = vmatpush.msra.mxu0 0.0
        %334 = vmatpush.msra.mxu0 0.0
        %335 = vmatpush.msra.mxu0 0.0
        %336 = vmatpush.msra.mxu0 0.0
        %337 = vmatpush.msra.mxu0 0.0
        %338 = vmatpush.msra.mxu0 %v318
        %339 = vmatmul.f32.gmra.mxu0 %v321
        %v340 = vpop.f32.mrf.mxu0
        %v341 = vadd.f32 0.0, %v340
        %342 = vdwg.mxu0
        %v344 = vsel %vm319, %v315, 0
        %346 = vmatpush.msra.mxu0 0.0
        %347 = vmatpush.msra.mxu0 0.0
        %348 = vmatpush.msra.mxu0 0.0
        %349 = vmatpush.msra.mxu0 0.0
        %350 = vmatpush.msra.mxu0 0.0
        %351 = vmatpush.msra.mxu0 0.0
        %352 = vmatpush.msra.mxu0 0.0
        %353 = vmatpush.msra.mxu0 0.0
        %354 = vmatpush.msra.mxu0 0.0
        %355 = vmatpush.msra.mxu0 0.0
        %356 = vmatpush.msra.mxu0 0.0
        %357 = vmatpush.msra.mxu0 0.0
        %358 = vmatpush.msra.mxu0 0.0
        %359 = vmatpush.msra.mxu0 0.0
        %360 = vmatpush.msra.mxu0 0.0
        %361 = vmatpush.msra.mxu0 %v316
        %362 = vmatmul.f32.gmra.mxu0 %v344
        %v363 = vpop.f32.mrf.mxu0
        %v364 = vadd.f32 %v341, %v363
        %365 = vdwg.mxu0
        %v366 = vld [vmem:[%s4] sm:$0xff]
        %368 = vset.pattern.permute.xlu0 0
        %369 = vperm.xlu0 %368, %v366
        %v370 = vpop.permute.xlu0 %369
        %v372 = vadd.f32 %v364, %v370
        %vm373 = vcmask 130048
        %374 = vst.msk [vmem:[%s314] sm:$0xff] %vm373, %v372
        %s375 = sand.u32 %s166, 1
        %s376 = scalar_lea.sflag [#allocation4], %s375
        %s377 = sand.u32 %s166, 1
        %s378 = smul.addr %s377, 8
        %s379 = scalar_lea.vmem [#allocation8], %s378
        // Predicated region
        $region53: #{tpu_custom_call.1} parent=39 // pred_check
          %p380 = pneg %p176
        $region54: #{tpu_custom_call.1} parent=39 // pred_check_branch
          %382 = sbr.rel (%p380) target = $region56
        $region55: #{tpu_custom_call.1} parent=39 // pred_region
          %384 = vsyncadd %s376, 0
          %s385 = sadd.s32 %s30, %s29
          %s386 = smul.addr %s385, 8
          %s387 = scalar_lea.hbm %s5, %s386
          %s389 = sshll.u32 %s379, 4
          %s390 = int_to_ptr.vmem [resolvable:$true] %s389
          %s391 = sshll.u32 %s387, 4
          %s392 = int_to_ptr.hbm [resolvable:$true] %s391
          %394 = dma.vmem_to_hbm [thread:$0]  %s390, 128, %s392, %s376
        $region56: #{tpu_custom_call.1} parent=39 // pred_fallthru
          _
      $region40: #{tpu_custom_call.1} parent=5 // pred_fallthru
        _
      %p395 = scmp.le.s32.totalorder 2, %s20
      // Predicated region
      $region57: #{tpu_custom_call.1} parent=5 // pred_check
        %p396 = pneg %p395
      $region58: #{tpu_custom_call.1} parent=5 // pred_check_branch
        %398 = sbr.rel (%p396) target = $region60
      $region59: #{tpu_custom_call.1} parent=5 // pred_region
        %s399 = ssub.s32 %s20, 2
        // Predicated region
        $region61: #{tpu_custom_call.1} parent=59 // pred_check
          %p400 = pneg %p182
        $region62: #{tpu_custom_call.1} parent=59 // pred_check_branch
          %402 = sbr.rel (%p400) target = $region64
        $region63: #{tpu_custom_call.1} parent=59 // pred_region
          %s403 = sand.u32 %s167, 1
          %s404 = scalar_lea.sflag [#allocation4], %s403
          %s405 = sand.u32 %s167, 1
          %s406 = smul.addr %s405, 8
          %s407 = scalar_lea.vmem [#allocation8], %s406
          %409 = dma.done %s404, 128
        $region64: #{tpu_custom_call.1} parent=59 // pred_fallthru
          _
      $region60: #{tpu_custom_call.1} parent=5 // pred_fallthru
        _
    $region6: #{tpu_custom_call.1} parent=1 // loop_footer
      %s24 = sadd.s32 1, %s20
    $region7: #{tpu_custom_call.1} parent=1 // loop_footer_branch
      %19 = sbr.rel target = $region3
    $region8: #{tpu_custom_call.1} parent=1 // loop_exit
      _
    %410 = vsyncpa [#allocation3], 1
    %s411 = scalar_lea.sflag [#allocation3], 1
    %412 = vsyncpa %s411, 1
    %413 = vsyncpa [#allocation6], 1
    %s414 = scalar_lea.sflag [#allocation6], 1
    %415 = vsyncpa %s414, 1
    %416 = vsyncpa [#allocation4], 1
    %s417 = scalar_lea.sflag [#allocation4], 1
    %418 = vsyncpa %s417, 1

</llo_original>
